<compile_context>
chip_gen: v6e
topology: v6e:2x2x1
jax: 0.10.0
libtpu: 0.0.40
codegen_flags: <defaults>
</compile_context>

<pallas_src>
import jax
import jax.numpy as jnp
from jax.experimental import pallas as pl
from jax.experimental.pallas import tpu as pltpu


_VMEM_LIMIT_BYTES = 40 * 1024 * 1024  # < v7x 64 MiB physical; << v5e/v6e 128 MiB


def _device_kind():
    try:
        return jax.devices()[0].device_kind.lower()
    except Exception:  # pragma: no cover - defensive
        return ""


def _class_block_budget_bytes():
    kind = _device_kind()
    # v5e default scoped VMEM is 16 MiB of 128 MiB physical -> keep blocks ~10 MiB.
    if "v5 lite" in kind or "v5e" in kind or "v5litepod" in kind:
        return 10 << 20
    # v6e (32/128 MiB) and v7x (32/64 MiB) comfortably take ~20 MiB of blocks.
    return 20 << 20


def _num_layer_blocks(total_layers):
    # v7x has 2 TensorCores per chip -> 2 parallel layer blocks; v5e/v6e: 1 TC,
    # so a single fat grid step (all weights resident) removes per-step overhead.
    if "v7" in _device_kind() and total_layers >= 2:
        return 2
    return 1


# ---------------------------------------------------------------------------
# Kernel 1: prompt construction  prompts = cat([prefix, ctx, suffix], dim=1)
# Grid over fixed-size blocks of classes; ctx is broadcast (same block always).
# ---------------------------------------------------------------------------
def _construct_prompts_kernel(prefix_ref, ctx_ref, suffix_ref, out_ref):
    # prefix_ref : (C_BLK, D)        sublane-dense 2D prefix
    # ctx_ref    : (n_ctx, D)
    # suffix_ref : (C_BLK, n_suf, D)
    # out_ref    : (C_BLK, seq_len, D)
    c_blk = out_ref.shape[0]
    n_ctx, d = ctx_ref.shape
    prefix_b = prefix_ref[...][:, None, :]                                    # (C,1,D)
    ctx_b = jnp.broadcast_to(ctx_ref[...][None, :, :], (c_blk, n_ctx, d))     # (C,n_ctx,D)
    # Single dense store of the whole tile -> no masked partial stores at
    # un-aligned sublane offsets.
    out_ref[...] = jnp.concatenate([prefix_b, ctx_b, suffix_ref[...]], axis=1)


def _pick_class_block(n_cls, per_class_bytes, budget_bytes):
    """Fixed-size class block (multiple of 8, never tiny) fitting the VMEM budget."""
    if n_cls <= 8 or n_cls * per_class_bytes <= budget_bytes:
        return n_cls                       # single full block (equals full dim -> layout OK)
    blk = int(budget_bytes // max(int(per_class_bytes), 1))
    blk = min(blk, 128, n_cls)
    blk = max(8, (blk // 8) * 8)           # multiple of 8 for the 2D prefix block
    return blk


def construct_prompts(prefix, ctx, suffix, *, class_block=None):
    # prefix: (n_cls, ctx_dim), ctx: (n_ctx, ctx_dim), suffix: (n_cls, n_suf, ctx_dim)
    assert prefix.dtype == ctx.dtype == suffix.dtype, "prompt pieces must share a dtype"
    n_cls, ctx_dim = prefix.shape
    n_ctx = ctx.shape[0]
    n_suf = suffix.shape[1]
    seq_len = 1 + n_ctx + n_suf

    if class_block is None:
        itemsize = jnp.dtype(prefix.dtype).itemsize
        # per class: (prefix + suffix) input rows + seq_len output rows, x2 for
        # double-buffering of the pipelined blocks.
        per_class = 2 * (seq_len + 1 + n_suf) * ctx_dim * itemsize
        class_block = _pick_class_block(n_cls, per_class, _class_block_budget_bytes())
    class_block = int(class_block)
    if class_block != n_cls:
        assert class_block % 8 == 0, (
            "class_block must be a multiple of 8 (sublane tiling) unless it equals n_cls")

    grid = (pl.cdiv(n_cls, class_block),)   # ragged last block handled by Pallas
    return pl.pallas_call(
        _construct_prompts_kernel,
        out_shape=jax.ShapeDtypeStruct((n_cls, seq_len, ctx_dim), ctx.dtype),
        grid_spec=pltpu.PrefetchScalarGridSpec(
            num_scalar_prefetch=0,
            grid=grid,
            in_specs=[
                pl.BlockSpec((class_block, ctx_dim), lambda c: (c, 0)),
                pl.BlockSpec((n_ctx, ctx_dim), lambda c: (0, 0)),
                pl.BlockSpec((class_block, n_suf, ctx_dim), lambda c: (c, 0, 0)),
            ],
            out_specs=pl.BlockSpec((class_block, seq_len, ctx_dim),
                                   lambda c: (c, 0, 0)),
        ),
        compiler_params=pltpu.CompilerParams(
            dimension_semantics=("parallel",),
            vmem_limit_bytes=_VMEM_LIMIT_BYTES),
    )(prefix, ctx, suffix)


# ---------------------------------------------------------------------------
# Kernel 2: fused batched Linear over `depth` layers (layer 0 = proj(ctx),
# layers 1..depth-1 = compound_prompt_projections). Purely weight-DMA bound:
# the only levers are bytes moved (bf16 weights, pre-stacked/pre-cast) and
# per-grid-step overhead (1 or 2 fat steps instead of one step per layer).
#   y[l] = x[l] @ w_t[l] + b[l], bf16 inputs, f32 MXU accumulation, f32 bias.
# ---------------------------------------------------------------------------
def _fused_linear_kernel(x_ref, w_ref, b_ref, o_ref):
    # x_ref: (LB, M, K), w_ref: (LB, K, N), b_ref: (LB, 1, N), o_ref: (LB, M, N)
    lb = x_ref.shape[0]
    for l in range(lb):  # tiny static trip count -> unrolled
        acc = jnp.dot(x_ref[l], w_ref[l], preferred_element_type=jnp.float32)
        o_ref[l] = (acc + b_ref[l].astype(jnp.float32)).astype(o_ref.dtype)


def fused_batched_linear(x, w_t, b, *, out_dtype, layers_per_block=None):
    # x: (L, M, K), w_t: (L, K, N), b: (L, 1, N) -> (L, M, N)
    L, M, K = x.shape
    N = w_t.shape[2]
    if layers_per_block is None:
        layers_per_block = pl.cdiv(L, _num_layer_blocks(L))
    layers_per_block = int(min(int(layers_per_block), L))
    grid = (pl.cdiv(L, layers_per_block),)   # ragged last block handled by Pallas
    return pl.pallas_call(
        _fused_linear_kernel,
        out_shape=jax.ShapeDtypeStruct((L, M, N), out_dtype),
        grid_spec=pltpu.PrefetchScalarGridSpec(
            num_scalar_prefetch=0,
            grid=grid,
            in_specs=[
                pl.BlockSpec((layers_per_block, M, K), lambda g: (g, 0, 0)),
                pl.BlockSpec((layers_per_block, K, N), lambda g: (g, 0, 0)),
                pl.BlockSpec((layers_per_block, 1, N), lambda g: (g, 0, 0)),
            ],
            out_specs=pl.BlockSpec((layers_per_block, M, N), lambda g: (g, 0, 0)),
        ),
        # parallel layer-block axis: 2 blocks shard across v7x's 2 TCs; on
        # single-TC chips the grid is a single step so it is a no-op.
        compiler_params=pltpu.CompilerParams(
            dimension_semantics=("parallel",),
            vmem_limit_bytes=_VMEM_LIMIT_BYTES),
    )(x, w_t, b)


# ---------------------------------------------------------------------------
# Module wrapper (parameters live in a dict; forward() mirrors the PyTorch one)
# ---------------------------------------------------------------------------
def init_params(key, *, n_cls, n_ctx, ctx_dim, vis_dim, seq_len, depth,
                dtype=jnp.float32):
    ks = jax.random.split(key, 6)
    n_suf = seq_len - 1 - n_ctx
    return {
        # learnable context vectors ~ N(0, 0.02)
        "ctx": 0.02 * jax.random.normal(ks[0], (n_ctx, ctx_dim), dtype),
        # compound text prompts (depth-1) ~ N(0, 0.02)
        "compound_prompts_text": 0.02 * jax.random.normal(
            ks[1], (depth - 1, n_ctx, ctx_dim), dtype),
        # Pre-STACKED projection weights: layer 0 = self.proj, layers 1.. =
        # compound_prompt_projections (PyTorch Linear weight (out,in) stored
        # transposed as (in,out) for the MXU).
        "w_t_all": (jax.random.normal(ks[2], (depth, ctx_dim, vis_dim), dtype)
                    / jnp.sqrt(jnp.asarray(ctx_dim, dtype))),
        "b_all": 0.01 * jax.random.normal(ks[3], (depth, 1, vis_dim), dtype),
        # frozen CLIP token embeddings (synthetic stand-ins; the real module
        # builds these with the CLIP tokenizer + token_embedding at __init__).
        # token_prefix kept 2D (n_cls, ctx_dim): equivalent to the PyTorch
        # (n_cls, 1, ctx_dim) buffer, but sublane-dense for the kernel.
        "token_prefix": jax.random.normal(ks[4], (n_cls, ctx_dim), dtype),
        "token_suffix": jax.random.normal(ks[5], (n_cls, n_suf, ctx_dim), dtype),
    }


def prepare_projection_weights(params, *, compute_dtype=jnp.bfloat16):
    """One-time cast of the stacked projection weights (reuse across forwards)."""
    return {
        "w_t_all": params["w_t_all"].astype(compute_dtype),
        "b_all": params["b_all"].astype(jnp.float32),
    }


def multimodal_prompt_learner_forward(params, prepared=None, *,
                                      compute_dtype=jnp.bfloat16):
    ctx = params["ctx"]                                   # (n_ctx, ctx_dim)

    # prompts = cat([prefix, ctx.expand(n_cls, ...), suffix], dim=1)
    prompts = construct_prompts(params["token_prefix"], ctx, params["token_suffix"])

    if prepared is None:
        prepared = prepare_projection_weights(params, compute_dtype=compute_dtype)

    # Activations (ctx + compound prompts) are tiny and learnable -> assembled
    # per forward; the heavy weight stack is already pre-stacked/pre-cast.
    compound = params["compound_prompts_text"]            # (depth-1, n_ctx, ctx_dim)
    x_all = jnp.concatenate([ctx[None], compound], axis=0).astype(compute_dtype)

    y_all = fused_batched_linear(x_all, prepared["w_t_all"], prepared["b_all"],
                                 out_dtype=ctx.dtype)     # (depth, n_ctx, vis_dim)

    proj_ctx = y_all[0]                                   # (n_ctx, vis_dim)
    visual_deep = y_all[1:]                               # (depth-1, n_ctx, vis_dim)

    compound_list = [compound[i] for i in range(compound.shape[0])]
    visual_list = [visual_deep[i] for i in range(visual_deep.shape[0])]
    return prompts, proj_ctx, compound_list, visual_list


# ---------------------------------------------------------------------------
# Reference (pure JAX) — applies the same bf16 quantization to the projection
# inputs so tolerances can stay tight.  NOTE: bf16 compute means parity with the
# PyTorch f32 Linear is only to bf16 precision.
# ---------------------------------------------------------------------------
def reference_forward(params, *, compute_dtype=jnp.bfloat16):
    ctx = params["ctx"]
    prefix = params["token_prefix"]
    suffix = params["token_suffix"]
    n_cls = prefix.shape[0]
    ctx_e = jnp.broadcast_to(ctx[None], (n_cls,) + ctx.shape)
    prompts = jnp.concatenate([prefix[:, None, :], ctx_e, suffix], axis=1)

    x_all = jnp.concatenate([ctx[None], params["compound_prompts_text"]], axis=0)
    xq = x_all.astype(compute_dtype).astype(jnp.float32)
    wq = params["w_t_all"].astype(compute_dtype).astype(jnp.float32)
    y = jnp.einsum("lmk,lkn->lmn", xq, wq) + params["b_all"].astype(jnp.float32)
    y = y.astype(ctx.dtype)
    return prompts, y[0], params["compound_prompts_text"], y[1:]


if __name__ == "__main__":
    # small but module-consistent sizes; n_cls=10 is deliberately not a multiple
    # of 8 so the ragged-block paths are exercised.
    #   n_cls=10 classes, n_ctx=4 context tokens, ctx_dim=128 text width,
    #   vis_dim=256 (stands in for 768), seq_len=16 (stands in for 77),
    #   prompt depth=3 -> 1 proj layer + 2 compound projection layers.
    n_cls, n_ctx, ctx_dim, vis_dim, seq_len, depth = 10, 4, 128, 256, 16, 3

    key = jax.random.PRNGKey(0)
    params = init_params(key, n_cls=n_cls, n_ctx=n_ctx, ctx_dim=ctx_dim,
                         vis_dim=vis_dim, seq_len=seq_len, depth=depth)
    prepared = prepare_projection_weights(params)   # one-time weight cast

    prompts, proj_ctx, compound_list, visual_list = jax.block_until_ready(
        multimodal_prompt_learner_forward(params, prepared))

    # correctness check against pure-JAX reference
    r_prompts, r_proj, r_compound, r_visual = reference_forward(params)
    assert prompts.shape == (n_cls, seq_len, ctx_dim)
    assert proj_ctx.shape == (n_ctx, vis_dim)
    assert len(compound_list) == depth - 1 and compound_list[0].shape == (n_ctx, ctx_dim)
    assert len(visual_list) == depth - 1 and visual_list[0].shape == (n_ctx, vis_dim)
    assert jnp.allclose(prompts, r_prompts, atol=1e-6)
    assert jnp.allclose(proj_ctx, r_proj, atol=2e-3, rtol=2e-3)
    assert jnp.allclose(jnp.stack(compound_list), r_compound, atol=1e-6)
    assert jnp.allclose(jnp.stack(visual_list), r_visual, atol=2e-3, rtol=2e-3)

    # explicit ragged-block checks:
    #   class_block=8 does not divide n_cls=10 (cdiv grid, clipped last block)
    prompts_ragged = jax.block_until_ready(construct_prompts(
        params["token_prefix"], params["ctx"], params["token_suffix"], class_block=8))
    assert jnp.allclose(prompts_ragged, r_prompts, atol=1e-6)
    #   layers_per_block=2 does not divide depth=3 (v7x-style 2-block path)
    x_all = jnp.concatenate(
        [params["ctx"][None], params["compound_prompts_text"]], axis=0).astype(jnp.bfloat16)
    y_ragged = jax.block_until_ready(fused_batched_linear(
        x_all, prepared["w_t_all"], prepared["b_all"],
        out_dtype=params["ctx"].dtype, layers_per_block=2))
    assert jnp.allclose(y_ragged[0], r_proj, atol=2e-3, rtol=2e-3)
    assert jnp.allclose(y_ragged[1:], r_visual, atol=2e-3, rtol=2e-3)

    # TODO(synk): reset()/reset_classnames()/CLIP tokenization + token_embedding
    # are host-side state management in the PyTorch module, not part of forward.
    print("KERNEL_OK")
</pallas_src>

<mosaic_0001>
module attributes {stable_mosaic.version = 11 : i64} {
  func.func @_construct_prompts_kernel(%arg0: i32, %arg1: memref<10x128xf32, #tpu.memory_space<vmem>>, %arg2: memref<4x128xf32, #tpu.memory_space<vmem>>, %arg3: memref<10x11x128xf32, #tpu.memory_space<vmem>>, %arg4: memref<10x16x128xf32, #tpu.memory_space<vmem>>) attributes {dimension_semantics = [#tpu.dimension_semantics<parallel>], iteration_bounds = array<i64: 1>, scalar_prefetch = 0 : i64, scratch_operands = 0 : i64, tpu.core_type = #tpu.core_type<tc>, window_params = [{transform_indices = @transform_0, window_bounds = array<i64: 10, 128>}, {pipeline_mode = #tpu.pipeline_mode<synchronous>, transform_indices = @transform_1, window_bounds = array<i64: 4, 128>}, {transform_indices = @transform_2, window_bounds = array<i64: 10, 11, 128>}, {transform_indices = @transform_3, window_bounds = array<i64: 10, 16, 128>}]} {
    %c0 = arith.constant 0 : index
    %c0_0 = arith.constant 0 : index
    %0 = vector.load %arg1[%c0, %c0_0] : memref<10x128xf32, #tpu.memory_space<vmem>>, vector<10x128xf32>
    %1 = vector.shape_cast %0 : vector<10x128xf32> to vector<10x1x128xf32>
    %c0_1 = arith.constant 0 : index
    %c0_2 = arith.constant 0 : index
    %2 = vector.load %arg2[%c0_1, %c0_2] : memref<4x128xf32, #tpu.memory_space<vmem>>, vector<4x128xf32>
    %3 = vector.shape_cast %2 : vector<4x128xf32> to vector<1x4x128xf32>
    %4 = vector.shape_cast %3 : vector<1x4x128xf32> to vector<1x4x128xf32>
    %5 = vector.broadcast %4 : vector<1x4x128xf32> to vector<10x4x128xf32>
    %c0_3 = arith.constant 0 : index
    %c0_4 = arith.constant 0 : index
    %c0_5 = arith.constant 0 : index
    %6 = vector.load %arg3[%c0_3, %c0_4, %c0_5] : memref<10x11x128xf32, #tpu.memory_space<vmem>>, vector<10x11x128xf32>
    %7 = tpu.concatenate %1, %5, %6 in 1 : vector<10x1x128xf32>, vector<10x4x128xf32>, vector<10x11x128xf32> -> vector<10x16x128xf32>
    %c0_6 = arith.constant 0 : index
    %c0_7 = arith.constant 0 : index
    %c0_8 = arith.constant 0 : index
    %8 = vector.load %arg4[%c0_6, %c0_7, %c0_8] : memref<10x16x128xf32, #tpu.memory_space<vmem>>, vector<10x16x128xf32>
    tpu.vector_store %arg4[%c0_6, %c0_7, %c0_8], %7 {strides = array<i32>} : memref<10x16x128xf32, #tpu.memory_space<vmem>>, vector<10x16x128xf32>,
    return
  }
  func.func @transform_0(%arg0: i32) -> (i32, i32) {
    %c0_i32 = arith.constant 0 : i32
    %c0_i32_0 = arith.constant 0 : i32
    return %arg0, %c0_i32 : i32, i32
  }
  func.func @transform_1(%arg0: i32) -> (i32, i32) {
    %c0_i32 = arith.constant 0 : i32
    %c0_i32_0 = arith.constant 0 : i32
    %c0_i32_1 = arith.constant 0 : i32
    return %c0_i32, %c0_i32_0 : i32, i32
  }
  func.func @transform_2(%arg0: i32) -> (i32, i32, i32) {
    %c0_i32 = arith.constant 0 : i32
    %c0_i32_0 = arith.constant 0 : i32
    %c0_i32_1 = arith.constant 0 : i32
    return %arg0, %c0_i32, %c0_i32_0 : i32, i32, i32
  }
  func.func @transform_3(%arg0: i32) -> (i32, i32, i32) {
    %c0_i32 = arith.constant 0 : i32
    %c0_i32_0 = arith.constant 0 : i32
    %c0_i32_1 = arith.constant 0 : i32
    return %arg0, %c0_i32, %c0_i32_0 : i32, i32, i32
  }
}

</mosaic_0001>

<llo_original>
// kernel: tpu_custom_call.1
$region0: #{tpu_custom_call.1}
  #allocation0 [shape = 'u32[]', space=smem, size = 0x4, offset = 0x4, fixed_abs, tag = 'smem constant byte address 0x4 - core index']
  #allocation1 [shape = 'u32[144,128]{1,0:T(1,128)}', space=vmem, size = 0x12000, scoped, tag = 'internal scratch']
  %s0 = inlined_call_operand.hbm [shape: f32[10,128], index: 0, kind: input, shape index: {}]
  %s1 = inlined_call_operand.hbm [shape: f32[4,128], index: 1, kind: input, shape index: {}]
  %s2 = inlined_call_operand.hbm [shape: f32[10,11,128], index: 2, kind: input, shape index: {}]
  %s3 = inlined_call_operand.hbm [shape: f32[10,16,128], index: 3, kind: output, shape index: {}]
  %s4 = sld [smem:[#allocation0]]
  $region34: #{tpu_custom_call.1} parent=0
    _
  %s6 = ssub.s32 1, %s4
  %s7 = scalar_select 0, %s6, %s4
  $region1: #{tpu_custom_call.1} parent=0
    #allocation2 [shape = 'u8[8192]{0}', space=vmem, size = 0x2000, scoped, tag = 'input window, operand 0, single buffered']
    #allocation3 [shape = 's32[1]{0}', space=sflag, size = 0x4, scoped, tag = 'scoped memory for tpu_custom_call.1']
    #allocation4 [shape = 's32[1]{0}', space=sflag, size = 0x4, scoped, tag = 'scoped memory for tpu_custom_call.1']
    #allocation5 [shape = 'u8[2048]{0}', space=vmem, size = 0x800, scoped, tag = 'input window, operand 1, single buffered']
    #allocation6 [shape = 's32[1]{0}', space=sflag, size = 0x4, scoped, tag = 'scoped memory for tpu_custom_call.1']
    #allocation7 [shape = 'u8[81920]{0}', space=vmem, size = 0x14000, scoped, tag = 'input window, operand 2, single buffered']
    #allocation8 [shape = 'u8[81920]{0}', space=vmem, size = 0x14000, scoped, tag = 'output window, operand 0, single buffered']
    %8 = vsyncpa [#allocation3], 0
    %9 = vsyncpa [#allocation6], 0
    %10 = vsyncpa [#allocation4], 0
    // Predicated region
    $region2: #{tpu_custom_call.1} parent=1 // pred_check
      _
    $region3: #{tpu_custom_call.1} parent=1 // pred_check_branch
      %12 = sbr.rel (0) target = $region5
    $region4: #{tpu_custom_call.1} parent=1 // pred_region
      %s14 = ssub.s32 256, 256
      %15 = vsyncadd [#allocation3], %s14
      %s16 = sshll.u32 [#allocation2], 4
      %s17 = int_to_ptr.vmem [resolvable:$true] %s16
      %22 = dma.hbm_to_vmem [thread:$0]  %s0, 256, %s17, [#allocation3], 128, 128, 8
    $region5: #{tpu_custom_call.1} parent=1 // pred_fallthru
      _
    // Predicated region
    $region6: #{tpu_custom_call.1} parent=1 // pred_check
      _
    $region7: #{tpu_custom_call.1} parent=1 // pred_check_branch
      %24 = sbr.rel (0) target = $region9
    $region8: #{tpu_custom_call.1} parent=1 // pred_region
      %s26 = ssub.s32 64, 64
      %27 = vsyncadd [#allocation6], %s26
      %s29 = sshll.u32 [#allocation5], 4
      %s30 = int_to_ptr.vmem [resolvable:$true] %s29
      %32 = dma.hbm_to_vmem [thread:$0]  %s1, 64, %s30, [#allocation6]
    $region9: #{tpu_custom_call.1} parent=1 // pred_fallthru
      _
    // Predicated region
    $region10: #{tpu_custom_call.1} parent=1 // pred_check
      _
    $region11: #{tpu_custom_call.1} parent=1 // pred_check_branch
      %34 = sbr.rel (0) target = $region13
    $region12: #{tpu_custom_call.1} parent=1 // pred_region
      %s36 = ssub.s32 2560, 2560
      %37 = vsyncadd [#allocation6], %s36
      %s38 = sshll.u32 [#allocation7], 4
      %s39 = int_to_ptr.vmem [resolvable:$true] %s38
      %44 = dma.hbm_to_vmem [thread:$0]  %s2, 2560, %s39, [#allocation6], 128, 128, 8
    $region13: #{tpu_custom_call.1} parent=1 // pred_fallthru
      _
    // Predicated region
    $region14: #{tpu_custom_call.1} parent=1 // pred_check
      _
    $region15: #{tpu_custom_call.1} parent=1 // pred_check_branch
      %46 = sbr.rel (0) target = $region17
    $region16: #{tpu_custom_call.1} parent=1 // pred_region
      %47 = dma.done [#allocation3], 256
    $region17: #{tpu_custom_call.1} parent=1 // pred_fallthru
      _
    // Predicated region
    $region18: #{tpu_custom_call.1} parent=1 // pred_check
      _
    $region19: #{tpu_custom_call.1} parent=1 // pred_check_branch
      %49 = sbr.rel (0) target = $region21
    $region20: #{tpu_custom_call.1} parent=1 // pred_region
      %50 = dma.done [#allocation6], 64
    $region21: #{tpu_custom_call.1} parent=1 // pred_fallthru
      _
    // Predicated region
    $region22: #{tpu_custom_call.1} parent=1 // pred_check
      _
    $region23: #{tpu_custom_call.1} parent=1 // pred_check_branch
      %52 = sbr.rel (0) target = $region25
    $region24: #{tpu_custom_call.1} parent=1 // pred_region
      %53 = dma.done [#allocation6], 2560
    $region25: #{tpu_custom_call.1} parent=1 // pred_fallthru
      _
    %v54 = vld [vmem:[#allocation2] sm:$0xff]
    %v55 = vld [vmem:[#allocation2 + $0x8] sm:$0x3]
    %v58 = vcombine.high %v54, %v54
    %v60 = vunpack.c.l.s4 1966171168
    %v61 = vunpack.c.0.s8 %v60
    %v62 = vlaneseq
    %v63 = vshrl.u32 %v62, 7
    %v64 = vsub.s32 %v61, %v63
    %v65 = vrot.slane %v54, %v64
    %v67 = vunpack.c.l.s4 1966171168
    %v68 = vunpack.c.0.s8 %v67
    %v69 = vlaneseq
    %v70 = vshrl.u32 %v69, 7
    %v71 = vsub.s32 %v68, %v70
    %v72 = vrot.slane %v58, %v71
    %v73 = vcombine.high %v65, %v65
    %v74 = vcombine.high %v72, %v72
    %v76 = vunpack.c.l.s4 1966171168
    %v77 = vunpack.c.0.s8 %v76
    %v78 = vlaneseq
    %v79 = vshrl.u32 %v78, 7
    %v80 = vsub.s32 %v77, %v79
    %v81 = vrot.slane %v65, %v80
    %v83 = vunpack.c.l.s4 1966171168
    %v84 = vunpack.c.0.s8 %v83
    %v85 = vlaneseq
    %v86 = vshrl.u32 %v85, 7
    %v87 = vsub.s32 %v84, %v86
    %v88 = vrot.slane %v72, %v87
    %v90 = vunpack.c.l.s4 1966171168
    %v91 = vunpack.c.0.s8 %v90
    %v92 = vlaneseq
    %v93 = vshrl.u32 %v92, 7
    %v94 = vsub.s32 %v91, %v93
    %v95 = vrot.slane %v73, %v94
    %v97 = vunpack.c.l.s4 1966171168
    %v98 = vunpack.c.0.s8 %v97
    %v99 = vlaneseq
    %v100 = vshrl.u32 %v99, 7
    %v101 = vsub.s32 %v98, %v100
    %v102 = vrot.slane %v74, %v101
    %v103 = vcombine.high %v81, %v81
    %v104 = vcombine.high %v88, %v88
    %v105 = vcombine.high %v95, %v95
    %v106 = vcombine.high %v102, %v102
    %v108 = vunpack.c.l.s4 1966171168
    %v109 = vunpack.c.0.s8 %v108
    %v110 = vlaneseq
    %v111 = vshrl.u32 %v110, 7
    %v112 = vsub.s32 %v109, %v111
    %v113 = vrot.slane %v55, %v112
    %v114 = vcombine.high %v113, %v113
    %v116 = vunpack.c.l.s4 1966171168
    %v117 = vunpack.c.0.s8 %v116
    %v118 = vlaneseq
    %v119 = vshrl.u32 %v118, 7
    %v120 = vsub.s32 %v117, %v119
    %v121 = vrot.slane %v113, %v120
    %v123 = vunpack.c.l.s4 1966171168
    %v124 = vunpack.c.0.s8 %v123
    %v125 = vlaneseq
    %v126 = vshrl.u32 %v125, 7
    %v127 = vsub.s32 %v124, %v126
    %v128 = vrot.slane %v114, %v127
    %v139 = vld [vmem:[#allocation5] sm:$0xf]
    %v140 = vld [vmem:[#allocation7] sm:$0xff]
    %v141 = vld [vmem:[#allocation7 + $0x8] sm:$0x7]
    %v142 = vld [vmem:[#allocation7 + $0x10] sm:$0xff]
    %v143 = vld [vmem:[#allocation7 + $0x18] sm:$0x7]
    %v144 = vld [vmem:[#allocation7 + $0x20] sm:$0xff]
    %v145 = vld [vmem:[#allocation7 + $0x28] sm:$0x7]
    %v146 = vld [vmem:[#allocation7 + $0x30] sm:$0xff]
    %v147 = vld [vmem:[#allocation7 + $0x38] sm:$0x7]
    %v148 = vld [vmem:[#allocation7 + $0x40] sm:$0xff]
    %v149 = vld [vmem:[#allocation7 + $0x48] sm:$0x7]
    %v150 = vld [vmem:[#allocation7 + $0x50] sm:$0xff]
    %v151 = vld [vmem:[#allocation7 + $0x58] sm:$0x7]
    %v152 = vld [vmem:[#allocation7 + $0x60] sm:$0xff]
    %v153 = vld [vmem:[#allocation7 + $0x68] sm:$0x7]
    %v154 = vld [vmem:[#allocation7 + $0x70] sm:$0xff]
    %v155 = vld [vmem:[#allocation7 + $0x78] sm:$0x7]
    %v156 = vld [vmem:[#allocation7 + $0x80] sm:$0xff]
    %v157 = vld [vmem:[#allocation7 + $0x88] sm:$0x7]
    %v158 = vld [vmem:[#allocation7 + $0x90] sm:$0xff]
    %v159 = vld [vmem:[#allocation7 + $0x98] sm:$0x7]
    %v161 = vrot.slane %v139, 7
    %vm183 = vcmask 1044480
    %v184 = vrot.slane %v140, 3
    %v185 = vrot.slane %v141, 3
    %v186 = vsel %vm183, %v184, %v185
    %v187 = vrot.slane %v142, 3
    %v188 = vrot.slane %v143, 3
    %v189 = vsel %vm183, %v187, %v188
    %v190 = vrot.slane %v144, 3
    %v191 = vrot.slane %v145, 3
    %v192 = vsel %vm183, %v190, %v191
    %v193 = vrot.slane %v146, 3
    %v194 = vrot.slane %v147, 3
    %v195 = vsel %vm183, %v193, %v194
    %v196 = vrot.slane %v148, 3
    %v197 = vrot.slane %v149, 3
    %v198 = vsel %vm183, %v196, %v197
    %v199 = vrot.slane %v150, 3
    %v200 = vrot.slane %v151, 3
    %v201 = vsel %vm183, %v199, %v200
    %v202 = vrot.slane %v152, 3
    %v203 = vrot.slane %v153, 3
    %v204 = vsel %vm183, %v202, %v203
    %v205 = vrot.slane %v154, 3
    %v206 = vrot.slane %v155, 3
    %v207 = vsel %vm183, %v205, %v206
    %v208 = vrot.slane %v156, 3
    %v209 = vrot.slane %v157, 3
    %v210 = vsel %vm183, %v208, %v209
    %v211 = vrot.slane %v158, 3
    %v212 = vrot.slane %v159, 3
    %v213 = vsel %vm183, %v211, %v212
    %vm234 = vcmask 1040384
    %v235 = vsel %vm234, %v81, %v161
    %v236 = vsel %vm234, %v95, %v161
    %v237 = vsel %vm234, %v103, %v161
    %v238 = vsel %vm234, %v105, %v161
    %v239 = vsel %vm234, %v88, %v161
    %v240 = vsel %vm234, %v102, %v161
    %v241 = vsel %vm234, %v104, %v161
    %v242 = vsel %vm234, %v106, %v161
    %v243 = vsel %vm234, %v121, %v161
    %v244 = vsel %vm234, %v128, %v161
    %v245 = vsel %vm183, %v235, %v184
    %v246 = vsel %vm183, %v236, %v187
    %v247 = vsel %vm183, %v237, %v190
    %v248 = vsel %vm183, %v238, %v193
    %v249 = vsel %vm183, %v239, %v196
    %v250 = vsel %vm183, %v240, %v199
    %v251 = vsel %vm183, %v241, %v202
    %v252 = vsel %vm183, %v242, %v205
    %v253 = vsel %vm183, %v243, %v208
    %v254 = vsel %vm183, %v244, %v211
    %255 = vst [vmem:[#allocation8] sm:$0xff] %v245
    %256 = vst [vmem:[#allocation8 + $0x8] sm:$0xff] %v186
    %257 = vst [vmem:[#allocation8 + $0x10] sm:$0xff] %v246
    %258 = vst [vmem:[#allocation8 + $0x18] sm:$0xff] %v189
    %259 = vst [vmem:[#allocation8 + $0x20] sm:$0xff] %v247
    %260 = vst [vmem:[#allocation8 + $0x28] sm:$0xff] %v192
    %261 = vst [vmem:[#allocation8 + $0x30] sm:$0xff] %v248
    %262 = vst [vmem:[#allocation8 + $0x38] sm:$0xff] %v195
    %263 = vst [vmem:[#allocation8 + $0x40] sm:$0xff] %v249
    %264 = vst [vmem:[#allocation8 + $0x48] sm:$0xff] %v198
    %265 = vst [vmem:[#allocation8 + $0x50] sm:$0xff] %v250
    %266 = vst [vmem:[#allocation8 + $0x58] sm:$0xff] %v201
    %267 = vst [vmem:[#allocation8 + $0x60] sm:$0xff] %v251
    %268 = vst [vmem:[#allocation8 + $0x68] sm:$0xff] %v204
    %269 = vst [vmem:[#allocation8 + $0x70] sm:$0xff] %v252
    %270 = vst [vmem:[#allocation8 + $0x78] sm:$0xff] %v207
    %271 = vst [vmem:[#allocation8 + $0x80] sm:$0xff] %v253
    %272 = vst [vmem:[#allocation8 + $0x88] sm:$0xff] %v210
    %273 = vst [vmem:[#allocation8 + $0x90] sm:$0xff] %v254
    %274 = vst [vmem:[#allocation8 + $0x98] sm:$0xff] %v213
    // Predicated region
    $region26: #{tpu_custom_call.1} parent=1 // pred_check
      _
    $region27: #{tpu_custom_call.1} parent=1 // pred_check_branch
      %276 = sbr.rel (0) target = $region29
    $region28: #{tpu_custom_call.1} parent=1 // pred_region
      %s278 = ssub.s32 2560, 2560
      %279 = vsyncadd [#allocation4], %s278
      %s280 = sshll.u32 [#allocation8], 4
      %s281 = int_to_ptr.vmem [resolvable:$true] %s280
      %286 = dma.vmem_to_hbm [thread:$0]  %s281, 2560, %s3, [#allocation4], 128, 128, 8
    $region29: #{tpu_custom_call.1} parent=1 // pred_fallthru
      _
    // Predicated region
    $region30: #{tpu_custom_call.1} parent=1 // pred_check
      _
    $region31: #{tpu_custom_call.1} parent=1 // pred_check_branch
      %288 = sbr.rel (0) target = $region33
    $region32: #{tpu_custom_call.1} parent=1 // pred_region
      %289 = dma.done [#allocation4], 2560
    $region33: #{tpu_custom_call.1} parent=1 // pred_fallthru
      _
    %290 = vsyncpa [#allocation3], 1
    %291 = vsyncpa [#allocation6], 1
    %292 = vsyncpa [#allocation4], 1

</llo_original>
